<compile_context>
chip_gen: v5e
topology: v5e:2x2
jax: 0.10.0
libtpu: 0.0.40
codegen_flags: <defaults>
</compile_context>

<pallas_src>
import numpy as np
import jax
import jax.numpy as jnp
from jax.experimental import pallas as pl
from jax.experimental.pallas import tpu as pltpu


def _build_levels(parent_idx):
    """Group nodes (index >= 1) by tree depth.

    Requires (and asserts) topological node order: parent_idx[n] < n.  Node 0 is the
    root; its parent entry is unused.
    """
    parent_idx = np.asarray(parent_idx, dtype=np.int64)
    n_nodes = parent_idx.shape[0]
    level = np.zeros(n_nodes, dtype=np.int64)
    for n in range(1, n_nodes):
        p = int(parent_idx[n])
        assert 0 <= p < n, (
            f"parent_idx must be topologically ordered (parent < node); "
            f"got parent_idx[{n}] = {p}")
        level[n] = level[p] + 1
    max_level = int(level.max()) if n_nodes > 1 else 0
    return [
        [(n, int(parent_idx[n])) for n in range(1, n_nodes) if level[n] == lvl]
        for lvl in range(1, max_level + 1)
    ]


def _make_kernel(levels, mem):
    """Build the kernel; the (static) tree level structure is baked in at trace time."""

    def kernel(scale_ref,                 # SMEM: (N,) f32, scale_ref[n] = prob[parent[n], n]
               x_ref,                     # VMEM: (N, bb, in_dim)
               w_x_ref, w_h_ref, b_ref,   # VMEM fused params (u columns pre-scaled by 2)
               ch_ref):                   # VMEM out: (N, bb, 2*mem) packed [c | h]
        n_nodes, bb, in_dim = x_ref.shape

        # ---- Phase 1: x-side gate pre-activations for ALL nodes in one MXU matmul.
        #      Kept as a value (N*bb*4*mem f32 ~ a handful of vregs at these sizes)
        #      and sliced below with static offsets.
        # TODO(synk): once N*bb*4*mem exceeds ~32 vregs, spill this to a VMEM scratch.
        x2d = x_ref[...].reshape(n_nodes * bb, in_dim)
        xg = jnp.dot(x2d, w_x_ref[...], preferred_element_type=jnp.float32) + b_ref[...]

        w_h = w_h_ref[...]                # hoisted weight load; reused every level
        # TODO(synk): stage w_h in the MXU across the walk (pltpu.matmul_push_rhs /
        #             matmul_acc_lhs / matmul_pop) to drop the per-level RHS push.

        def gates_to_ch(gates, parent_c):
            # One full-width (bb, 4*mem) sigmoid pass.  The u columns were pre-scaled
            # by 2 host-side, so tanh(u) == 2*sigmoid(2u) - 1 comes out of the same pass.
            sig = jax.nn.sigmoid(gates)
            i_g = sig[:, 0:mem]
            o_g = sig[:, mem:2 * mem]
            u_g = 2.0 * sig[:, 2 * mem:3 * mem] - 1.0
            f_g = sig[:, 3 * mem:4 * mem]
            c = i_g * u_g + f_g * parent_c            # single parent (K = 1)
            h = o_g * jnp.tanh(c)
            return c, h

        # ---- Root (node 0): zero parent state.
        zeros = jnp.zeros((bb, mem), jnp.float32)
        c0, h0 = gates_to_ch(xg[0:bb, :], zeros)
        ch_ref[0] = jnp.concatenate([c0, h0], axis=1)

        # Parent states stay live in vregs between levels; the packed output store per
        # node is off the serial dependency chain.
        c_live, h_live = {0: c0}, {0: h0}

        # ---- Phase 2: top-down walk, ONE MXU matmul per tree level (unique parents).
        for level_nodes in levels:
            parents = sorted({p for (_, p) in level_nodes})
            if len(parents) == 1:
                h_stack = h_live[parents[0]]
            else:
                h_stack = jnp.concatenate([h_live[p] for p in parents], axis=0)
            hw_stack = jnp.dot(h_stack, w_h, preferred_element_type=jnp.float32)
            hw = {p: hw_stack[k * bb:(k + 1) * bb, :] for k, p in enumerate(parents)}

            c_next, h_next = {}, {}
            for n, p in level_nodes:
                s = scale_ref[n]                      # scalar from SMEM
                # Per-edge scale factors out of the linear map: s * (h_p @ W_h).
                gates = xg[n * bb:(n + 1) * bb, :] + s * hw[p]
                c, h = gates_to_ch(gates, s * c_live[p])
                c_next[n], h_next[n] = c, h
                ch_ref[n] = jnp.concatenate([c, h], axis=1)
            c_live, h_live = c_next, h_next           # parents of the next level

    return kernel


def weighted_topdown_tree_lstm(x, params, parent_idx, scales, *, batch_block=None):
    """Top-down weighted tree LSTM over all nodes.  Returns (c_all, h_all).

    x          : (N, B, in_dim)  node-major inputs (topological node order)
    parent_idx : (N,) host ints  parent of each node (entry 0 unused: root); static
    scales     : (N,) float32    prob[parent_idx[n], n] (entry 0 unused)
    """
    N, B, in_dim = x.shape
    mem = params["w_fh"].shape[0]

    levels = _build_levels(parent_idx)                # also asserts topological order

    # ---- host-side one-time weight fusion: gate column order [ i | o | u | f ].
    w_x = jnp.concatenate([params["w_ioux"], params["w_fx"]], axis=1)   # (in_dim, 4*mem)
    w_h = jnp.concatenate([params["w_iouh"], params["w_fh"]], axis=1)   # (mem,    4*mem)
    b = jnp.concatenate([params["b_ioux"] + params["b_iouh"],
                         params["b_fx"] + params["b_fh"]], axis=1)      # (1, 4*mem)
    # Pre-scale the u-gate columns by 2 so tanh folds into the single sigmoid pass.
    u = slice(2 * mem, 3 * mem)
    w_x = w_x.at[:, u].multiply(2.0)
    w_h = w_h.at[:, u].multiply(2.0)
    b = b.at[:, u].multiply(2.0)

    # One grid step by default (best on 1-TC v5e/v6e).  On v7x pass batch_block=B//2
    # to split the batch across the two TensorCores.
    if batch_block is None:
        batch_block = B
    assert B % batch_block == 0
    assert batch_block == B or batch_block % 8 == 0, "batch block must be sublane-aligned"
    n_bblk = B // batch_block

    # VMEM footprint (f32): double-buffered x + packed c|h blocks, weights, and the
    # live xg / per-level hW values.  Derived (not inherited) so it stays sane on
    # v7x's 64 MiB VMEM; 4x headroom, floored at 8 MiB, capped at 64 MiB.
    elems = (2 * N * batch_block * in_dim
             + 2 * N * batch_block * 2 * mem
             + 2 * (in_dim + mem + 1) * 4 * mem
             + 2 * N * batch_block * 4 * mem)
    vmem_bytes = int(min(max(4 * elems * 4, 8 * 1024 * 1024), 64 * 1024 * 1024))

    kernel = _make_kernel(levels, mem)

    ch = pl.pallas_call(
        kernel,
        grid=(n_bblk,),
        in_specs=[
            pl.BlockSpec(memory_space=pltpu.SMEM),                        # scales
            pl.BlockSpec((N, batch_block, in_dim), lambda i: (0, i, 0)),  # x slab
            pl.BlockSpec((in_dim, 4 * mem), lambda i: (0, 0)),            # W_x
            pl.BlockSpec((mem, 4 * mem), lambda i: (0, 0)),               # W_h
            pl.BlockSpec((1, 4 * mem), lambda i: (0, 0)),                 # b
        ],
        out_specs=pl.BlockSpec((N, batch_block, 2 * mem), lambda i: (0, i, 0)),
        out_shape=jax.ShapeDtypeStruct((N, B, 2 * mem), jnp.float32),
        compiler_params=pltpu.CompilerParams(
            # TODO(synk): use pltpu.CORE_PARALLEL on v7x when n_bblk == num TCs.
            dimension_semantics=("parallel",),
            vmem_limit_bytes=vmem_bytes),
    )(scales, x, w_x, w_h, b)

    # Split the packed lane-dense output (layout plumbing only, outside the kernel).
    return ch[..., :mem], ch[..., mem:]


def reference_forward(x, params, parent_idx, scales):
    """Pure-JAX replica of the PyTorch recursion (topological node order, unfused)."""
    N, B, _ = x.shape
    mem = params["w_fh"].shape[0]
    c_list, h_list = [None] * N, [None] * N
    for n in range(N):
        if n == 0:
            pc = jnp.zeros((B, mem), jnp.float32)
            ph = jnp.zeros((B, mem), jnp.float32)
        else:
            p = int(parent_idx[n])
            pc = scales[n] * c_list[p]
            ph = scales[n] * h_list[p]
        iou = (x[n] @ params["w_ioux"] + params["b_ioux"]
               + ph @ params["w_iouh"] + params["b_iouh"])
        i_g = jax.nn.sigmoid(iou[:, :mem])
        o_g = jax.nn.sigmoid(iou[:, mem:2 * mem])
        u_g = jnp.tanh(iou[:, 2 * mem:])
        f = jax.nn.sigmoid(ph @ params["w_fh"] + params["b_fh"]
                           + x[n] @ params["w_fx"] + params["b_fx"])
        c = i_g * u_g + f * pc
        h = o_g * jnp.tanh(c)
        c_list[n], h_list[n] = c, h
    return jnp.stack(c_list), jnp.stack(h_list)


if __name__ == "__main__":
    # 7-node label tree (topological node order: parent index < node index)
    #        0
    #      /   \
    #     1     2
    #    / \   / \
    #   3   4 5   6
    N, B, IN_DIM, MEM_DIM = 7, 16, 32, 32           # 4*MEM = 128 lanes (lane-dense gates)
    parent_list = [0, 0, 0, 1, 1, 2, 2]             # node 0's entry unused (root)

    key = jax.random.PRNGKey(0)
    keys = jax.random.split(key, 11)

    x = jax.random.normal(keys[0], (N, B, IN_DIM), dtype=jnp.float32)

    def lin_w(k, shape):
        return 0.1 * jax.random.normal(k, shape, dtype=jnp.float32)

    params = {
        "w_ioux": lin_w(keys[1], (IN_DIM, 3 * MEM_DIM)),
        "b_ioux": lin_w(keys[2], (1, 3 * MEM_DIM)),
        "w_iouh": lin_w(keys[3], (MEM_DIM, 3 * MEM_DIM)),
        "b_iouh": lin_w(keys[4], (1, 3 * MEM_DIM)),
        "w_fx":   lin_w(keys[5], (IN_DIM, MEM_DIM)),
        "b_fx":   lin_w(keys[6], (1, MEM_DIM)),
        "w_fh":   lin_w(keys[7], (MEM_DIM, MEM_DIM)),
        "b_fh":   lin_w(keys[8], (1, MEM_DIM)),
    }

    # prob parameter (self.prob), shape [N, N]; per-edge scalar = prob[parent.idx, node.idx]
    prob = jax.random.uniform(keys[9], (N, N), dtype=jnp.float32, minval=0.1, maxval=1.0)
    parent_idx_np = np.asarray(parent_list, dtype=np.int32)
    scales = prob[jnp.asarray(parent_idx_np), jnp.arange(N)]
    scales = scales.at[0].set(0.0)                  # root has no parent (unused)

    # Default batch_block=B: single grid step (best on 1-TC v5e/v6e; v7x would pass B//2).
    c_all, h_all = weighted_topdown_tree_lstm(x, params, parent_idx_np, scales)
    jax.block_until_ready((c_all, h_all))

    c_ref, h_ref = reference_forward(x, params, parent_idx_np, scales)
    np.testing.assert_allclose(np.asarray(c_all), np.asarray(c_ref), rtol=1e-3, atol=1e-3)
    np.testing.assert_allclose(np.asarray(h_all), np.asarray(h_ref), rtol=1e-3, atol=1e-3)

    # Root top-down state (what the PyTorch forward returns): (c_all[0], h_all[0])
    print("KERNEL_OK")
</pallas_src>

<mosaic_0001>
module attributes {stable_mosaic.version = 11 : i64} {
  func.func @kernel(%arg0: i32, %arg1: memref<7xf32, #tpu.memory_space<smem>>, %arg2: memref<7x16x32xf32, #tpu.memory_space<vmem>>, %arg3: memref<32x128xf32, #tpu.memory_space<vmem>>, %arg4: memref<32x128xf32, #tpu.memory_space<vmem>>, %arg5: memref<1x128xf32, #tpu.memory_space<vmem>>, %arg6: memref<7x16x64xf32, #tpu.memory_space<vmem>>) attributes {dimension_semantics = [#tpu.dimension_semantics<parallel>], iteration_bounds = array<i64: 1>, scalar_prefetch = 0 : i64, scratch_operands = 0 : i64, tpu.core_type = #tpu.core_type<tc>, window_params = [{transform_indices = @transform_0, window_bounds = array<i64: 7>}, {transform_indices = @transform_1, window_bounds = array<i64: 7, 16, 32>}, {pipeline_mode = #tpu.pipeline_mode<synchronous>, transform_indices = @transform_2, window_bounds = array<i64: 32, 128>}, {pipeline_mode = #tpu.pipeline_mode<synchronous>, transform_indices = @transform_3, window_bounds = array<i64: 32, 128>}, {pipeline_mode = #tpu.pipeline_mode<synchronous>, transform_indices = @transform_4, window_bounds = array<i64: 1, 128>}, {transform_indices = @transform_5, window_bounds = array<i64: 7, 16, 64>}]} {
    %c0 = arith.constant 0 : index
    %c0_0 = arith.constant 0 : index
    %c0_1 = arith.constant 0 : index
    %0 = vector.load %arg2[%c0, %c0_0, %c0_1] : memref<7x16x32xf32, #tpu.memory_space<vmem>>, vector<7x16x32xf32>
    %1 = vector.shape_cast %0 : vector<7x16x32xf32> to vector<112x32xf32>
    %c0_2 = arith.constant 0 : index
    %c0_3 = arith.constant 0 : index
    %2 = vector.load %arg3[%c0_2, %c0_3] : memref<32x128xf32, #tpu.memory_space<vmem>>, vector<32x128xf32>
    %cst = arith.constant dense<0.000000e+00> : vector<112x128xf32>
    %3 = tpu.matmul %1, %2, %cst {dimension_numbers = #tpu.dot_dimension_numbers<[1], [0], [0], [1], [0, 0, 1, 1], [], []>} : vector<112x32xf32>, vector<32x128xf32>, vector<112x128xf32> -> vector<112x128xf32>
    %c0_4 = arith.constant 0 : index
    %c0_5 = arith.constant 0 : index
    %4 = vector.load %arg5[%c0_4, %c0_5] : memref<1x128xf32, #tpu.memory_space<vmem>>, vector<1x128xf32>
    %5 = vector.broadcast %4 : vector<1x128xf32> to vector<112x128xf32>
    %6 = arith.addf %3, %5 : vector<112x128xf32>
    %c0_6 = arith.constant 0 : index
    %c0_7 = arith.constant 0 : index
    %7 = vector.load %arg4[%c0_6, %c0_7] : memref<32x128xf32, #tpu.memory_space<vmem>>, vector<32x128xf32>
    %cst_8 = arith.constant 0.000000e+00 : f32
    %8 = vector.broadcast %cst_8 : f32 to vector<16x32xf32>
    %9 = vector.extract_strided_slice %6 {offsets = [0, 0], sizes = [16, 128], strides = [1, 1]} : vector<112x128xf32> to vector<16x128xf32>
    %10 = arith.negf %9 : vector<16x128xf32>
    %11 = math.exp %10 : vector<16x128xf32>
    %cst_9 = arith.constant 1.000000e+00 : f32
    %12 = vector.broadcast %cst_9 : f32 to vector<16x128xf32>
    %13 = arith.addf %12, %11 : vector<16x128xf32>
    %14 = arith.divf %12, %13 : vector<16x128xf32>
    %15 = vector.extract_strided_slice %14 {offsets = [0, 0], sizes = [16, 32], strides = [1, 1]} : vector<16x128xf32> to vector<16x32xf32>
    %16 = vector.extract_strided_slice %14 {offsets = [0, 32], sizes = [16, 32], strides = [1, 1]} : vector<16x128xf32> to vector<16x32xf32>
    %17 = vector.extract_strided_slice %14 {offsets = [0, 64], sizes = [16, 32], strides = [1, 1]} : vector<16x128xf32> to vector<16x32xf32>
    %cst_10 = arith.constant 2.000000e+00 : f32
    %18 = vector.broadcast %cst_10 : f32 to vector<16x32xf32>
    %19 = arith.mulf %18, %17 : vector<16x32xf32>
    %cst_11 = arith.constant 1.000000e+00 : f32
    %20 = vector.broadcast %cst_11 : f32 to vector<16x32xf32>
    %21 = arith.subf %19, %20 : vector<16x32xf32>
    %22 = vector.extract_strided_slice %14 {offsets = [0, 96], sizes = [16, 32], strides = [1, 1]} : vector<16x128xf32> to vector<16x32xf32>
    %23 = arith.mulf %15, %21 : vector<16x32xf32>
    %24 = arith.mulf %22, %8 : vector<16x32xf32>
    %25 = arith.addf %23, %24 : vector<16x32xf32>
    %26 = math.tanh %25 : vector<16x32xf32>
    %27 = arith.mulf %16, %26 : vector<16x32xf32>
    %28 = tpu.concatenate %25, %27 in 1 : vector<16x32xf32>, vector<16x32xf32> -> vector<16x64xf32>
    %c0_12 = arith.constant 0 : index
    %c0_13 = arith.constant 0 : index
    %c0_14 = arith.constant 0 : index
    %29 = vector.load %arg6[%c0_12, %c0_13, %c0_14] : memref<7x16x64xf32, #tpu.memory_space<vmem>>, vector<1x16x64xf32>
    %30 = vector.shape_cast %29 : vector<1x16x64xf32> to vector<16x64xf32>
    %31 = vector.shape_cast %28 : vector<16x64xf32> to vector<1x16x64xf32>
    tpu.vector_store %arg6[%c0_12, %c0_13, %c0_14], %31 {strides = array<i32>} : memref<7x16x64xf32, #tpu.memory_space<vmem>>, vector<1x16x64xf32>,
    %cst_15 = arith.constant dense<0.000000e+00> : vector<16x128xf32>
    %32 = tpu.matmul %27, %7, %cst_15 {dimension_numbers = #tpu.dot_dimension_numbers<[1], [0], [0], [1], [0, 0, 1, 1], [], []>} : vector<16x32xf32>, vector<32x128xf32>, vector<16x128xf32> -> vector<16x128xf32>
    %c1 = arith.constant 1 : index
    %33 = memref.load %arg1[%c1] : memref<7xf32, #tpu.memory_space<smem>>
    %34 = vector.extract_strided_slice %6 {offsets = [16, 0], sizes = [16, 128], strides = [1, 1]} : vector<112x128xf32> to vector<16x128xf32>
    %35 = vector.broadcast %33 : f32 to vector<16x128xf32>
    %36 = arith.mulf %35, %32 : vector<16x128xf32>
    %37 = arith.addf %34, %36 : vector<16x128xf32>
    %38 = vector.broadcast %33 : f32 to vector<16x32xf32>
    %39 = arith.mulf %38, %25 : vector<16x32xf32>
    %40 = arith.negf %37 : vector<16x128xf32>
    %41 = math.exp %40 : vector<16x128xf32>
    %cst_16 = arith.constant 1.000000e+00 : f32
    %42 = vector.broadcast %cst_16 : f32 to vector<16x128xf32>
    %43 = arith.addf %42, %41 : vector<16x128xf32>
    %44 = arith.divf %42, %43 : vector<16x128xf32>
    %45 = vector.extract_strided_slice %44 {offsets = [0, 0], sizes = [16, 32], strides = [1, 1]} : vector<16x128xf32> to vector<16x32xf32>
    %46 = vector.extract_strided_slice %44 {offsets = [0, 32], sizes = [16, 32], strides = [1, 1]} : vector<16x128xf32> to vector<16x32xf32>
    %47 = vector.extract_strided_slice %44 {offsets = [0, 64], sizes = [16, 32], strides = [1, 1]} : vector<16x128xf32> to vector<16x32xf32>
    %cst_17 = arith.constant 2.000000e+00 : f32
    %48 = vector.broadcast %cst_17 : f32 to vector<16x32xf32>
    %49 = arith.mulf %48, %47 : vector<16x32xf32>
    %cst_18 = arith.constant 1.000000e+00 : f32
    %50 = vector.broadcast %cst_18 : f32 to vector<16x32xf32>
    %51 = arith.subf %49, %50 : vector<16x32xf32>
    %52 = vector.extract_strided_slice %44 {offsets = [0, 96], sizes = [16, 32], strides = [1, 1]} : vector<16x128xf32> to vector<16x32xf32>
    %53 = arith.mulf %45, %51 : vector<16x32xf32>
    %54 = arith.mulf %52, %39 : vector<16x32xf32>
    %55 = arith.addf %53, %54 : vector<16x32xf32>
    %56 = math.tanh %55 : vector<16x32xf32>
    %57 = arith.mulf %46, %56 : vector<16x32xf32>
    %58 = tpu.concatenate %55, %57 in 1 : vector<16x32xf32>, vector<16x32xf32> -> vector<16x64xf32>
    %c1_19 = arith.constant 1 : index
    %c0_20 = arith.constant 0 : index
    %c0_21 = arith.constant 0 : index
    %59 = vector.load %arg6[%c1_19, %c0_20, %c0_21] : memref<7x16x64xf32, #tpu.memory_space<vmem>>, vector<1x16x64xf32>
    %60 = vector.shape_cast %59 : vector<1x16x64xf32> to vector<16x64xf32>
    %61 = vector.shape_cast %58 : vector<16x64xf32> to vector<1x16x64xf32>
    tpu.vector_store %arg6[%c1_19, %c0_20, %c0_21], %61 {strides = array<i32>} : memref<7x16x64xf32, #tpu.memory_space<vmem>>, vector<1x16x64xf32>,
    %c2 = arith.constant 2 : index
    %62 = memref.load %arg1[%c2] : memref<7xf32, #tpu.memory_space<smem>>
    %63 = vector.extract_strided_slice %6 {offsets = [32, 0], sizes = [16, 128], strides = [1, 1]} : vector<112x128xf32> to vector<16x128xf32>
    %64 = vector.broadcast %62 : f32 to vector<16x128xf32>
    %65 = arith.mulf %64, %32 : vector<16x128xf32>
    %66 = arith.addf %63, %65 : vector<16x128xf32>
    %67 = vector.broadcast %62 : f32 to vector<16x32xf32>
    %68 = arith.mulf %67, %25 : vector<16x32xf32>
    %69 = arith.negf %66 : vector<16x128xf32>
    %70 = math.exp %69 : vector<16x128xf32>
    %cst_22 = arith.constant 1.000000e+00 : f32
    %71 = vector.broadcast %cst_22 : f32 to vector<16x128xf32>
    %72 = arith.addf %71, %70 : vector<16x128xf32>
    %73 = arith.divf %71, %72 : vector<16x128xf32>
    %74 = vector.extract_strided_slice %73 {offsets = [0, 0], sizes = [16, 32], strides = [1, 1]} : vector<16x128xf32> to vector<16x32xf32>
    %75 = vector.extract_strided_slice %73 {offsets = [0, 32], sizes = [16, 32], strides = [1, 1]} : vector<16x128xf32> to vector<16x32xf32>
    %76 = vector.extract_strided_slice %73 {offsets = [0, 64], sizes = [16, 32], strides = [1, 1]} : vector<16x128xf32> to vector<16x32xf32>
    %cst_23 = arith.constant 2.000000e+00 : f32
    %77 = vector.broadcast %cst_23 : f32 to vector<16x32xf32>
    %78 = arith.mulf %77, %76 : vector<16x32xf32>
    %cst_24 = arith.constant 1.000000e+00 : f32
    %79 = vector.broadcast %cst_24 : f32 to vector<16x32xf32>
    %80 = arith.subf %78, %79 : vector<16x32xf32>
    %81 = vector.extract_strided_slice %73 {offsets = [0, 96], sizes = [16, 32], strides = [1, 1]} : vector<16x128xf32> to vector<16x32xf32>
    %82 = arith.mulf %74, %80 : vector<16x32xf32>
    %83 = arith.mulf %81, %68 : vector<16x32xf32>
    %84 = arith.addf %82, %83 : vector<16x32xf32>
    %85 = math.tanh %84 : vector<16x32xf32>
    %86 = arith.mulf %75, %85 : vector<16x32xf32>
    %87 = tpu.concatenate %84, %86 in 1 : vector<16x32xf32>, vector<16x32xf32> -> vector<16x64xf32>
    %c2_25 = arith.constant 2 : index
    %c0_26 = arith.constant 0 : index
    %c0_27 = arith.constant 0 : index
    %88 = vector.load %arg6[%c2_25, %c0_26, %c0_27] : memref<7x16x64xf32, #tpu.memory_space<vmem>>, vector<1x16x64xf32>
    %89 = vector.shape_cast %88 : vector<1x16x64xf32> to vector<16x64xf32>
    %90 = vector.shape_cast %87 : vector<16x64xf32> to vector<1x16x64xf32>
    tpu.vector_store %arg6[%c2_25, %c0_26, %c0_27], %90 {strides = array<i32>} : memref<7x16x64xf32, #tpu.memory_space<vmem>>, vector<1x16x64xf32>,
    %91 = tpu.concatenate %57, %86 in 0 : vector<16x32xf32>, vector<16x32xf32> -> vector<32x32xf32>
    %cst_28 = arith.constant dense<0.000000e+00> : vector<32x128xf32>
    %92 = tpu.matmul %91, %7, %cst_28 {dimension_numbers = #tpu.dot_dimension_numbers<[1], [0], [0], [1], [0, 0, 1, 1], [], []>} : vector<32x32xf32>, vector<32x128xf32>, vector<32x128xf32> -> vector<32x128xf32>
    %93 = vector.extract_strided_slice %92 {offsets = [0, 0], sizes = [16, 128], strides = [1, 1]} : vector<32x128xf32> to vector<16x128xf32>
    %94 = vector.extract_strided_slice %92 {offsets = [16, 0], sizes = [16, 128], strides = [1, 1]} : vector<32x128xf32> to vector<16x128xf32>
    %c3 = arith.constant 3 : index
    %95 = memref.load %arg1[%c3] : memref<7xf32, #tpu.memory_space<smem>>
    %96 = vector.extract_strided_slice %6 {offsets = [48, 0], sizes = [16, 128], strides = [1, 1]} : vector<112x128xf32> to vector<16x128xf32>
    %97 = vector.broadcast %95 : f32 to vector<16x128xf32>
    %98 = arith.mulf %97, %93 : vector<16x128xf32>
    %99 = arith.addf %96, %98 : vector<16x128xf32>
    %100 = vector.broadcast %95 : f32 to vector<16x32xf32>
    %101 = arith.mulf %100, %55 : vector<16x32xf32>
    %102 = arith.negf %99 : vector<16x128xf32>
    %103 = math.exp %102 : vector<16x128xf32>
    %cst_29 = arith.constant 1.000000e+00 : f32
    %104 = vector.broadcast %cst_29 : f32 to vector<16x128xf32>
    %105 = arith.addf %104, %103 : vector<16x128xf32>
    %106 = arith.divf %104, %105 : vector<16x128xf32>
    %107 = vector.extract_strided_slice %106 {offsets = [0, 0], sizes = [16, 32], strides = [1, 1]} : vector<16x128xf32> to vector<16x32xf32>
    %108 = vector.extract_strided_slice %106 {offsets = [0, 32], sizes = [16, 32], strides = [1, 1]} : vector<16x128xf32> to vector<16x32xf32>
    %109 = vector.extract_strided_slice %106 {offsets = [0, 64], sizes = [16, 32], strides = [1, 1]} : vector<16x128xf32> to vector<16x32xf32>
    %cst_30 = arith.constant 2.000000e+00 : f32
    %110 = vector.broadcast %cst_30 : f32 to vector<16x32xf32>
    %111 = arith.mulf %110, %109 : vector<16x32xf32>
    %cst_31 = arith.constant 1.000000e+00 : f32
    %112 = vector.broadcast %cst_31 : f32 to vector<16x32xf32>
    %113 = arith.subf %111, %112 : vector<16x32xf32>
    %114 = vector.extract_strided_slice %106 {offsets = [0, 96], sizes = [16, 32], strides = [1, 1]} : vector<16x128xf32> to vector<16x32xf32>
    %115 = arith.mulf %107, %113 : vector<16x32xf32>
    %116 = arith.mulf %114, %101 : vector<16x32xf32>
    %117 = arith.addf %115, %116 : vector<16x32xf32>
    %118 = math.tanh %117 : vector<16x32xf32>
    %119 = arith.mulf %108, %118 : vector<16x32xf32>
    %120 = tpu.concatenate %117, %119 in 1 : vector<16x32xf32>, vector<16x32xf32> -> vector<16x64xf32>
    %c3_32 = arith.constant 3 : index
    %c0_33 = arith.constant 0 : index
    %c0_34 = arith.constant 0 : index
    %121 = vector.load %arg6[%c3_32, %c0_33, %c0_34] : memref<7x16x64xf32, #tpu.memory_space<vmem>>, vector<1x16x64xf32>
    %122 = vector.shape_cast %121 : vector<1x16x64xf32> to vector<16x64xf32>
    %123 = vector.shape_cast %120 : vector<16x64xf32> to vector<1x16x64xf32>
    tpu.vector_store %arg6[%c3_32, %c0_33, %c0_34], %123 {strides = array<i32>} : memref<7x16x64xf32, #tpu.memory_space<vmem>>, vector<1x16x64xf32>,
    %c4 = arith.constant 4 : index
    %124 = memref.load %arg1[%c4] : memref<7xf32, #tpu.memory_space<smem>>
    %125 = vector.extract_strided_slice %6 {offsets = [64, 0], sizes = [16, 128], strides = [1, 1]} : vector<112x128xf32> to vector<16x128xf32>
    %126 = vector.broadcast %124 : f32 to vector<16x128xf32>
    %127 = arith.mulf %126, %93 : vector<16x128xf32>
    %128 = arith.addf %125, %127 : vector<16x128xf32>
    %129 = vector.broadcast %124 : f32 to vector<16x32xf32>
    %130 = arith.mulf %129, %55 : vector<16x32xf32>
    %131 = arith.negf %128 : vector<16x128xf32>
    %132 = math.exp %131 : vector<16x128xf32>
    %cst_35 = arith.constant 1.000000e+00 : f32
    %133 = vector.broadcast %cst_35 : f32 to vector<16x128xf32>
    %134 = arith.addf %133, %132 : vector<16x128xf32>
    %135 = arith.divf %133, %134 : vector<16x128xf32>
    %136 = vector.extract_strided_slice %135 {offsets = [0, 0], sizes = [16, 32], strides = [1, 1]} : vector<16x128xf32> to vector<16x32xf32>
    %137 = vector.extract_strided_slice %135 {offsets = [0, 32], sizes = [16, 32], strides = [1, 1]} : vector<16x128xf32> to vector<16x32xf32>
    %138 = vector.extract_strided_slice %135 {offsets = [0, 64], sizes = [16, 32], strides = [1, 1]} : vector<16x128xf32> to vector<16x32xf32>
    %cst_36 = arith.constant 2.000000e+00 : f32
    %139 = vector.broadcast %cst_36 : f32 to vector<16x32xf32>
    %140 = arith.mulf %139, %138 : vector<16x32xf32>
    %cst_37 = arith.constant 1.000000e+00 : f32
    %141 = vector.broadcast %cst_37 : f32 to vector<16x32xf32>
    %142 = arith.subf %140, %141 : vector<16x32xf32>
    %143 = vector.extract_strided_slice %135 {offsets = [0, 96], sizes = [16, 32], strides = [1, 1]} : vector<16x128xf32> to vector<16x32xf32>
    %144 = arith.mulf %136, %142 : vector<16x32xf32>
    %145 = arith.mulf %143, %130 : vector<16x32xf32>
    %146 = arith.addf %144, %145 : vector<16x32xf32>
    %147 = math.tanh %146 : vector<16x32xf32>
    %148 = arith.mulf %137, %147 : vector<16x32xf32>
    %149 = tpu.concatenate %146, %148 in 1 : vector<16x32xf32>, vector<16x32xf32> -> vector<16x64xf32>
    %c4_38 = arith.constant 4 : index
    %c0_39 = arith.constant 0 : index
    %c0_40 = arith.constant 0 : index
    %150 = vector.load %arg6[%c4_38, %c0_39, %c0_40] : memref<7x16x64xf32, #tpu.memory_space<vmem>>, vector<1x16x64xf32>
    %151 = vector.shape_cast %150 : vector<1x16x64xf32> to vector<16x64xf32>
    %152 = vector.shape_cast %149 : vector<16x64xf32> to vector<1x16x64xf32>
    tpu.vector_store %arg6[%c4_38, %c0_39, %c0_40], %152 {strides = array<i32>} : memref<7x16x64xf32, #tpu.memory_space<vmem>>, vector<1x16x64xf32>,
    %c5 = arith.constant 5 : index
    %153 = memref.load %arg1[%c5] : memref<7xf32, #tpu.memory_space<smem>>
    %154 = vector.extract_strided_slice %6 {offsets = [80, 0], sizes = [16, 128], strides = [1, 1]} : vector<112x128xf32> to vector<16x128xf32>
    %155 = vector.broadcast %153 : f32 to vector<16x128xf32>
    %156 = arith.mulf %155, %94 : vector<16x128xf32>
    %157 = arith.addf %154, %156 : vector<16x128xf32>
    %158 = vector.broadcast %153 : f32 to vector<16x32xf32>
    %159 = arith.mulf %158, %84 : vector<16x32xf32>
    %160 = arith.negf %157 : vector<16x128xf32>
    %161 = math.exp %160 : vector<16x128xf32>
    %cst_41 = arith.constant 1.000000e+00 : f32
    %162 = vector.broadcast %cst_41 : f32 to vector<16x128xf32>
    %163 = arith.addf %162, %161 : vector<16x128xf32>
    %164 = arith.divf %162, %163 : vector<16x128xf32>
    %165 = vector.extract_strided_slice %164 {offsets = [0, 0], sizes = [16, 32], strides = [1, 1]} : vector<16x128xf32> to vector<16x32xf32>
    %166 = vector.extract_strided_slice %164 {offsets = [0, 32], sizes = [16, 32], strides = [1, 1]} : vector<16x128xf32> to vector<16x32xf32>
    %167 = vector.extract_strided_slice %164 {offsets = [0, 64], sizes = [16, 32], strides = [1, 1]} : vector<16x128xf32> to vector<16x32xf32>
    %cst_42 = arith.constant 2.000000e+00 : f32
    %168 = vector.broadcast %cst_42 : f32 to vector<16x32xf32>
    %169 = arith.mulf %168, %167 : vector<16x32xf32>
    %cst_43 = arith.constant 1.000000e+00 : f32
    %170 = vector.broadcast %cst_43 : f32 to vector<16x32xf32>
    %171 = arith.subf %169, %170 : vector<16x32xf32>
    %172 = vector.extract_strided_slice %164 {offsets = [0, 96], sizes = [16, 32], strides = [1, 1]} : vector<16x128xf32> to vector<16x32xf32>
    %173 = arith.mulf %165, %171 : vector<16x32xf32>
    %174 = arith.mulf %172, %159 : vector<16x32xf32>
    %175 = arith.addf %173, %174 : vector<16x32xf32>
    %176 = math.tanh %175 : vector<16x32xf32>
    %177 = arith.mulf %166, %176 : vector<16x32xf32>
    %178 = tpu.concatenate %175, %177 in 1 : vector<16x32xf32>, vector<16x32xf32> -> vector<16x64xf32>
    %c5_44 = arith.constant 5 : index
    %c0_45 = arith.constant 0 : index
    %c0_46 = arith.constant 0 : index
    %179 = vector.load %arg6[%c5_44, %c0_45, %c0_46] : memref<7x16x64xf32, #tpu.memory_space<vmem>>, vector<1x16x64xf32>
    %180 = vector.shape_cast %179 : vector<1x16x64xf32> to vector<16x64xf32>
    %181 = vector.shape_cast %178 : vector<16x64xf32> to vector<1x16x64xf32>
    tpu.vector_store %arg6[%c5_44, %c0_45, %c0_46], %181 {strides = array<i32>} : memref<7x16x64xf32, #tpu.memory_space<vmem>>, vector<1x16x64xf32>,
    %c6 = arith.constant 6 : index
    %182 = memref.load %arg1[%c6] : memref<7xf32, #tpu.memory_space<smem>>
    %183 = vector.extract_strided_slice %6 {offsets = [96, 0], sizes = [16, 128], strides = [1, 1]} : vector<112x128xf32> to vector<16x128xf32>
    %184 = vector.broadcast %182 : f32 to vector<16x128xf32>
    %185 = arith.mulf %184, %94 : vector<16x128xf32>
    %186 = arith.addf %183, %185 : vector<16x128xf32>
    %187 = vector.broadcast %182 : f32 to vector<16x32xf32>
    %188 = arith.mulf %187, %84 : vector<16x32xf32>
    %189 = arith.negf %186 : vector<16x128xf32>
    %190 = math.exp %189 : vector<16x128xf32>
    %cst_47 = arith.constant 1.000000e+00 : f32
    %191 = vector.broadcast %cst_47 : f32 to vector<16x128xf32>
    %192 = arith.addf %191, %190 : vector<16x128xf32>
    %193 = arith.divf %191, %192 : vector<16x128xf32>
    %194 = vector.extract_strided_slice %193 {offsets = [0, 0], sizes = [16, 32], strides = [1, 1]} : vector<16x128xf32> to vector<16x32xf32>
    %195 = vector.extract_strided_slice %193 {offsets = [0, 32], sizes = [16, 32], strides = [1, 1]} : vector<16x128xf32> to vector<16x32xf32>
    %196 = vector.extract_strided_slice %193 {offsets = [0, 64], sizes = [16, 32], strides = [1, 1]} : vector<16x128xf32> to vector<16x32xf32>
    %cst_48 = arith.constant 2.000000e+00 : f32
    %197 = vector.broadcast %cst_48 : f32 to vector<16x32xf32>
    %198 = arith.mulf %197, %196 : vector<16x32xf32>
    %cst_49 = arith.constant 1.000000e+00 : f32
    %199 = vector.broadcast %cst_49 : f32 to vector<16x32xf32>
    %200 = arith.subf %198, %199 : vector<16x32xf32>
    %201 = vector.extract_strided_slice %193 {offsets = [0, 96], sizes = [16, 32], strides = [1, 1]} : vector<16x128xf32> to vector<16x32xf32>
    %202 = arith.mulf %194, %200 : vector<16x32xf32>
    %203 = arith.mulf %201, %188 : vector<16x32xf32>
    %204 = arith.addf %202, %203 : vector<16x32xf32>
    %205 = math.tanh %204 : vector<16x32xf32>
    %206 = arith.mulf %195, %205 : vector<16x32xf32>
    %207 = tpu.concatenate %204, %206 in 1 : vector<16x32xf32>, vector<16x32xf32> -> vector<16x64xf32>
    %c6_50 = arith.constant 6 : index
    %c0_51 = arith.constant 0 : index
    %c0_52 = arith.constant 0 : index
    %208 = vector.load %arg6[%c6_50, %c0_51, %c0_52] : memref<7x16x64xf32, #tpu.memory_space<vmem>>, vector<1x16x64xf32>
    %209 = vector.shape_cast %208 : vector<1x16x64xf32> to vector<16x64xf32>
    %210 = vector.shape_cast %207 : vector<16x64xf32> to vector<1x16x64xf32>
    tpu.vector_store %arg6[%c6_50, %c0_51, %c0_52], %210 {strides = array<i32>} : memref<7x16x64xf32, #tpu.memory_space<vmem>>, vector<1x16x64xf32>,
    return
  }
  func.func @transform_0(%arg0: i32) -> i32 {
    %c0_i32 = arith.constant 0 : i32
    %c0_i32_0 = arith.constant 0 : i32
    return %c0_i32 : i32
  }
  func.func @transform_1(%arg0: i32) -> (i32, i32, i32) {
    %c0_i32 = arith.constant 0 : i32
    %c0_i32_0 = arith.constant 0 : i32
    %c0_i32_1 = arith.constant 0 : i32
    return %c0_i32, %arg0, %c0_i32_0 : i32, i32, i32
  }
  func.func @transform_2(%arg0: i32) -> (i32, i32) {
    %c0_i32 = arith.constant 0 : i32
    %c0_i32_0 = arith.constant 0 : i32
    %c0_i32_1 = arith.constant 0 : i32
    return %c0_i32, %c0_i32_0 : i32, i32
  }
  func.func @transform_3(%arg0: i32) -> (i32, i32) {
    %c0_i32 = arith.constant 0 : i32
    %c0_i32_0 = arith.constant 0 : i32
    %c0_i32_1 = arith.constant 0 : i32
    return %c0_i32, %c0_i32_0 : i32, i32
  }
  func.func @transform_4(%arg0: i32) -> (i32, i32) {
    %c0_i32 = arith.constant 0 : i32
    %c0_i32_0 = arith.constant 0 : i32
    %c0_i32_1 = arith.constant 0 : i32
    return %c0_i32, %c0_i32_0 : i32, i32
  }
  func.func @transform_5(%arg0: i32) -> (i32, i32, i32) {
    %c0_i32 = arith.constant 0 : i32
    %c0_i32_0 = arith.constant 0 : i32
    %c0_i32_1 = arith.constant 0 : i32
    return %c0_i32, %arg0, %c0_i32_0 : i32, i32, i32
  }
}

</mosaic_0001>

<llo_original>
// kernel: tpu_custom_call.1
$region0: #{tpu_custom_call.1}
  #allocation0 [shape = 'u32[]', space=smem, size = 0x4, offset = 0x4, fixed_abs, tag = 'smem constant byte address 0x4 - core index']
  #allocation1 [shape = 'u32[72,128]{1,0:T(1,128)}', space=vmem, size = 0x9000, scoped, tag = 'internal scratch']
  %s0 = inlined_call_operand.hbm [shape: f32[7], index: 0, kind: input, shape index: {}]
  %s1 = inlined_call_operand.hbm [shape: f32[7,16,32], index: 1, kind: input, shape index: {}]
  %s2 = inlined_call_operand.hbm [shape: f32[32,128], index: 2, kind: input, shape index: {}]
  %s3 = inlined_call_operand.hbm [shape: f32[32,128], index: 3, kind: input, shape index: {}]
  %s4 = inlined_call_operand.vmem [shape: f32[1,128], index: 4, kind: input, shape index: {}]
  %s5 = inlined_call_operand.hbm [shape: f32[7,16,64], index: 5, kind: output, shape index: {}]
  %s6 = sld [smem:[#allocation0]]
  $region46: #{tpu_custom_call.1} parent=0
    _
  %s8 = ssub.s32 1, %s6
  %s9 = scalar_select 0, %s8, %s6
  $region1: #{tpu_custom_call.1} parent=0
    #allocation2 [shape = 'u8[512]{0}', space=smem, size = 0x200, scoped, tag = 'input window, operand 0, single buffered']
    #allocation3 [shape = 's32[1]{0}', space=sflag, size = 0x4, scoped, tag = 'scoped memory for tpu_custom_call.1']
    #allocation4 [shape = 's32[1]{0}', space=sflag, size = 0x4, scoped, tag = 'scoped memory for tpu_custom_call.1']
    #allocation5 [shape = 's32[1]{0}', space=sflag, size = 0x4, scoped, tag = 'scoped memory for tpu_custom_call.1']
    #allocation6 [shape = 'u8[57344]{0}', space=vmem, size = 0xe000, scoped, tag = 'input window, operand 1, single buffered']
    #allocation7 [shape = 'u8[16384]{0}', space=vmem, size = 0x4000, scoped, tag = 'input window, operand 2, single buffered']
    #allocation8 [shape = 's32[1]{0}', space=sflag, size = 0x4, scoped, tag = 'scoped memory for tpu_custom_call.1']
    #allocation9 [shape = 'u8[16384]{0}', space=vmem, size = 0x4000, scoped, tag = 'input window, operand 3, single buffered']
    #allocation10 [shape = 'u8[57344]{0}', space=vmem, size = 0xe000, scoped, tag = 'output window, operand 0, single buffered']
    %10 = vsyncpa [#allocation5], 0
    %11 = vsyncpa [#allocation3], 0
    %12 = vsyncpa [#allocation8], 0
    %13 = vsyncpa [#allocation4], 0
    // Predicated region
    $region2: #{tpu_custom_call.1} parent=1 // pred_check
      _
    $region3: #{tpu_custom_call.1} parent=1 // pred_check_branch
      %15 = sbr.rel (0) target = $region5
    $region4: #{tpu_custom_call.1} parent=1 // pred_region
      %17 = vsyncadd [#allocation5], 0
      %s19 = sshll.u32 %s0, 4
      %s20 = int_to_ptr.hbm [resolvable:$true] %s19
      %22 = dma.hbm_to_smem %s20, 16, [#allocation2], [#allocation5]
    $region5: #{tpu_custom_call.1} parent=1 // pred_fallthru
      _
    // Predicated region
    $region6: #{tpu_custom_call.1} parent=1 // pred_check
      _
    $region7: #{tpu_custom_call.1} parent=1 // pred_check_branch
      %24 = sbr.rel (0) target = $region9
    $region8: #{tpu_custom_call.1} parent=1 // pred_region
      %26 = vsyncadd [#allocation3], 0
      %s27 = sshll.u32 %s1, 4
      %s28 = int_to_ptr.hbm [resolvable:$true] %s27
      %s29 = sshll.u32 [#allocation6], 4
      %s30 = int_to_ptr.vmem [resolvable:$true] %s29
      %35 = dma.hbm_to_vmem [thread:$0]  %s28, 1792, %s30, [#allocation3], 128, 128, 8
    $region9: #{tpu_custom_call.1} parent=1 // pred_fallthru
      _
    // Predicated region
    $region10: #{tpu_custom_call.1} parent=1 // pred_check
      _
    $region11: #{tpu_custom_call.1} parent=1 // pred_check_branch
      %37 = sbr.rel (0) target = $region13
    $region12: #{tpu_custom_call.1} parent=1 // pred_region
      %39 = vsyncadd [#allocation8], 0
      %s40 = sshll.u32 %s2, 4
      %s41 = int_to_ptr.hbm [resolvable:$true] %s40
      %s42 = sshll.u32 [#allocation7], 4
      %s43 = int_to_ptr.vmem [resolvable:$true] %s42
      %48 = dma.hbm_to_vmem [thread:$0]  %s41, 512, %s43, [#allocation8], 128, 128, 8
    $region13: #{tpu_custom_call.1} parent=1 // pred_fallthru
      _
    // Predicated region
    $region14: #{tpu_custom_call.1} parent=1 // pred_check
      _
    $region15: #{tpu_custom_call.1} parent=1 // pred_check_branch
      %50 = sbr.rel (0) target = $region17
    $region16: #{tpu_custom_call.1} parent=1 // pred_region
      %52 = vsyncadd [#allocation8], 0
      %s53 = sshll.u32 %s3, 4
      %s54 = int_to_ptr.hbm [resolvable:$true] %s53
      %s55 = sshll.u32 [#allocation9], 4
      %s56 = int_to_ptr.vmem [resolvable:$true] %s55
      %61 = dma.hbm_to_vmem [thread:$0]  %s54, 512, %s56, [#allocation8], 128, 128, 8
    $region17: #{tpu_custom_call.1} parent=1 // pred_fallthru
      _
    // Predicated region
    $region18: #{tpu_custom_call.1} parent=1 // pred_check
      _
    $region19: #{tpu_custom_call.1} parent=1 // pred_check_branch
      %63 = sbr.rel (0) target = $region21
    $region20: #{tpu_custom_call.1} parent=1 // pred_region
      _
    $region21: #{tpu_custom_call.1} parent=1 // pred_fallthru
      _
    // Predicated region
    $region22: #{tpu_custom_call.1} parent=1 // pred_check
      _
    $region23: #{tpu_custom_call.1} parent=1 // pred_check_branch
      %65 = sbr.rel (0) target = $region25
    $region24: #{tpu_custom_call.1} parent=1 // pred_region
      %67 = dma.done [#allocation5], 16
    $region25: #{tpu_custom_call.1} parent=1 // pred_fallthru
      _
    // Predicated region
    $region26: #{tpu_custom_call.1} parent=1 // pred_check
      _
    $region27: #{tpu_custom_call.1} parent=1 // pred_check_branch
      %69 = sbr.rel (0) target = $region29
    $region28: #{tpu_custom_call.1} parent=1 // pred_region
      %71 = dma.done [#allocation3], 1792
    $region29: #{tpu_custom_call.1} parent=1 // pred_fallthru
      _
    // Predicated region
    $region30: #{tpu_custom_call.1} parent=1 // pred_check
      _
    $region31: #{tpu_custom_call.1} parent=1 // pred_check_branch
      %73 = sbr.rel (0) target = $region33
    $region32: #{tpu_custom_call.1} parent=1 // pred_region
      %75 = dma.done [#allocation8], 512
    $region33: #{tpu_custom_call.1} parent=1 // pred_fallthru
      _
    // Predicated region
    $region34: #{tpu_custom_call.1} parent=1 // pred_check
      _
    $region35: #{tpu_custom_call.1} parent=1 // pred_check_branch
      %77 = sbr.rel (0) target = $region37
    $region36: #{tpu_custom_call.1} parent=1 // pred_region
      %79 = dma.done [#allocation8], 512
    $region37: #{tpu_custom_call.1} parent=1 // pred_fallthru
      _
    %80 = sfence
    %v81 = vld [vmem:[#allocation6] sm:$0xff]
    %v82 = vld [vmem:[#allocation6 + $0x8] sm:$0xff]
    %v83 = vld [vmem:[#allocation6 + $0x10] sm:$0xff]
    %v84 = vld [vmem:[#allocation6 + $0x18] sm:$0xff]
    %v85 = vld [vmem:[#allocation6 + $0x20] sm:$0xff]
    %v86 = vld [vmem:[#allocation6 + $0x28] sm:$0xff]
    %v87 = vld [vmem:[#allocation6 + $0x30] sm:$0xff]
    %v88 = vld [vmem:[#allocation6 + $0x38] sm:$0xff]
    %v89 = vld [vmem:[#allocation6 + $0x40] sm:$0xff]
    %v90 = vld [vmem:[#allocation6 + $0x48] sm:$0xff]
    %v91 = vld [vmem:[#allocation6 + $0x50] sm:$0xff]
    %v92 = vld [vmem:[#allocation6 + $0x58] sm:$0xff]
    %v93 = vld [vmem:[#allocation6 + $0x60] sm:$0xff]
    %v94 = vld [vmem:[#allocation6 + $0x68] sm:$0xff]
    %v95 = vld [vmem:[#allocation7] sm:$0xff]
    %v96 = vld [vmem:[#allocation7 + $0x8] sm:$0xff]
    %v97 = vld [vmem:[#allocation7 + $0x10] sm:$0xff]
    %v98 = vld [vmem:[#allocation7 + $0x18] sm:$0xff]
    %v99 = vld [vmem:[%s4] sm:$0x1]
    %v101 = vperm.slane %v99, 0
    %vm103 = vcmask 261120
    %v105 = vsel %vm103, %v81, 0
    %v108 = vsel %vm103, %v82, 0
    %v111 = vsel %vm103, %v83, 0
    %v114 = vsel %vm103, %v84, 0
    %v117 = vsel %vm103, %v85, 0
    %v120 = vsel %vm103, %v86, 0
    %v123 = vsel %vm103, %v87, 0
    %v126 = vsel %vm103, %v88, 0
    %v129 = vsel %vm103, %v89, 0
    %v132 = vsel %vm103, %v90, 0
    %v135 = vsel %vm103, %v91, 0
    %v138 = vsel %vm103, %v92, 0
    %v141 = vsel %vm103, %v93, 0
    %v144 = vsel %vm103, %v94, 0
    %146 = vmatpush.msra.mxu0 0.0
    %147 = vmatpush.msra.mxu0 0.0
    %148 = vmatpush.msra.mxu0 0.0
    %149 = vmatpush.msra.mxu0 0.0
    %150 = vmatpush.msra.mxu0 0.0
    %151 = vmatpush.msra.mxu0 0.0
    %152 = vmatpush.msra.mxu0 0.0
    %153 = vmatpush.msra.mxu0 0.0
    %154 = vmatpush.msra.mxu0 0.0
    %155 = vmatpush.msra.mxu0 0.0
    %156 = vmatpush.msra.mxu0 0.0
    %157 = vmatpush.msra.mxu0 0.0
    %158 = vmatpush.msra.mxu0 %v98
    %159 = vmatpush.msra.mxu0 %v97
    %160 = vmatpush.msra.mxu0 %v96
    %161 = vmatpush.msra.mxu0 %v95
    %162 = vmatmul.f32.gmra.mxu0 %v105
    %v163 = vpop.f32.mrf.mxu0
    %v164 = vadd.f32 %v101, %v163
    %165 = vmatmul.f32.gmra.mxu0 %v108
    %v166 = vpop.f32.mrf.mxu0
    %v167 = vadd.f32 %v101, %v166
    %168 = vmatmul.f32.gmra.mxu0 %v111
    %v169 = vpop.f32.mrf.mxu0
    %v170 = vadd.f32 %v101, %v169
    %171 = vmatmul.f32.gmra.mxu0 %v114
    %v172 = vpop.f32.mrf.mxu0
    %v173 = vadd.f32 %v101, %v172
    %174 = vmatmul.f32.gmra.mxu0 %v117
    %v175 = vpop.f32.mrf.mxu0
    %v176 = vadd.f32 %v101, %v175
    %177 = vmatmul.f32.gmra.mxu0 %v120
    %v178 = vpop.f32.mrf.mxu0
    %v179 = vadd.f32 %v101, %v178
    %180 = vmatmul.f32.gmra.mxu0 %v123
    %v181 = vpop.f32.mrf.mxu0
    %v182 = vadd.f32 %v101, %v181
    %183 = vmatmul.f32.gmra.mxu0 %v126
    %v184 = vpop.f32.mrf.mxu0
    %v185 = vadd.f32 %v101, %v184
    %186 = vmatmul.f32.gmra.mxu0 %v129
    %v187 = vpop.f32.mrf.mxu0
    %v188 = vadd.f32 %v101, %v187
    %189 = vmatmul.f32.gmra.mxu0 %v132
    %v190 = vpop.f32.mrf.mxu0
    %v191 = vadd.f32 %v101, %v190
    %192 = vmatmul.f32.gmra.mxu0 %v135
    %v193 = vpop.f32.mrf.mxu0
    %v194 = vadd.f32 %v101, %v193
    %195 = vmatmul.f32.gmra.mxu0 %v138
    %v196 = vpop.f32.mrf.mxu0
    %v197 = vadd.f32 %v101, %v196
    %198 = vmatmul.f32.gmra.mxu0 %v141
    %v199 = vpop.f32.mrf.mxu0
    %v200 = vadd.f32 %v101, %v199
    %201 = vmatmul.f32.gmra.mxu0 %v144
    %v202 = vpop.f32.mrf.mxu0
    %v203 = vadd.f32 %v101, %v202
    %204 = vdwg.mxu0
    %v205 = vld [vmem:[#allocation9] sm:$0xff]
    %v206 = vld [vmem:[#allocation9 + $0x8] sm:$0xff]
    %v207 = vld [vmem:[#allocation9 + $0x10] sm:$0xff]
    %v208 = vld [vmem:[#allocation9 + $0x18] sm:$0xff]
    %v209 = vxor.u32 %v164, 2147483648
    %v210 = vxor.u32 %v167, 2147483648
    %v211 = vmul.f32 %v209, 1.442695
    %v212 = vpow.pop %v211
    %v213 = vmul.f32 %v210, 1.442695
    %v214 = vpow.pop %v213
    %v215 = vadd.f32 %v212, 1.0
    %v216 = vadd.f32 %v214, 1.0
    %v217 = vrcp.pop %v215
    %v218 = vmul.f32 %v215, %v217
    %v219 = vsub.f32 1.0, %v218
    %v220 = vmul.f32 %v217, %v219
    %v221 = vadd.f32 %v217, %v220
    %vm222 = vweird.f32 %v215
    %vm223 = vweird.f32 %v217
    %vm224 = vmor %vm222, %vm223
    %v225 = vsel %vm224, %v217, %v221
    %v226 = vand.u32 2147483647, %v215
    %vm227 = vcmp.eq.f32.partialorder %v226, 8.507059e+37
    %v228 = vand.u32 %v215, 2147483648
    %v229 = vor.u32 1.1754944e-38, %v228
    %v230 = vsel %vm227, %v229, %v225
    %v231 = vmul.f32 1.0, %v230
    %v232 = vrcp.pop %v216
    %v233 = vmul.f32 %v216, %v232
    %v234 = vsub.f32 1.0, %v233
    %v235 = vmul.f32 %v232, %v234
    %v236 = vadd.f32 %v232, %v235
    %vm237 = vweird.f32 %v216
    %vm238 = vweird.f32 %v232
    %vm239 = vmor %vm237, %vm238
    %v240 = vsel %vm239, %v232, %v236
    %v241 = vand.u32 2147483647, %v216
    %vm242 = vcmp.eq.f32.partialorder %v241, 8.507059e+37
    %v243 = vand.u32 %v216, 2147483648
    %v244 = vor.u32 1.1754944e-38, %v243
    %v245 = vsel %vm242, %v244, %v240
    %v246 = vmul.f32 1.0, %v245
    %v247 = vmul.f32 %v231, 2.0
    %v248 = vmul.f32 %v246, 2.0
    %v249 = vsub.f32 %v247, 1.0
    %v250 = vsub.f32 %v248, 1.0
    %253 = vrot.lane.b32.xlu0 %v249, 64
    %v254 = vpop.permute.xlu0 %253
    %255 = vrot.lane.b32.xlu0 %v250, 64
    %v256 = vpop.permute.xlu0 %255
    %v259 = vmul.f32 %v231, %v254
    %v260 = vmul.f32 %v246, %v256
    %v261 = vmul.f32 %v231, 0.0
    %v262 = vmul.f32 %v246, 0.0
    %265 = vrot.lane.b32.xlu0 %v261, 32
    %v266 = vpop.permute.xlu0 %265
    %267 = vrot.lane.b32.xlu0 %v262, 32
    %v268 = vpop.permute.xlu0 %267
    %v271 = vadd.f32 %v259, %v266
    %v272 = vadd.f32 %v260, %v268
    %v273 = vtanh.pop %v271
    %v274 = vtanh.pop %v272
    %277 = vrot.lane.b32.xlu0 %v273, 32
    %v278 = vpop.permute.xlu0 %277
    %279 = vrot.lane.b32.xlu0 %v274, 32
    %v280 = vpop.permute.xlu0 %279
    %v283 = vmul.f32 %v231, %v278
    %v284 = vmul.f32 %v246, %v280
    %v285 = vsel %vm103, %v271, %v283
    %v286 = vsel %vm103, %v272, %v284
    %vm287 = vcmask 523264
    %288 = vst.msk [vmem:[#allocation10] sm:$0xff] %vm287, %v285
    %289 = vst.msk [vmem:[#allocation10 + $0x8] sm:$0xff] %vm287, %v286
    %292 = vrot.lane.b32.xlu0 %v283, 96
    %v293 = vpop.permute.xlu0 %292
    %294 = vrot.lane.b32.xlu0 %v284, 96
    %v295 = vpop.permute.xlu0 %294
    %v296 = vsel %vm103, %v293, 0
    %v298 = vsel %vm103, %v295, 0
    %300 = vmatpush.msra.mxu0 0.0
    %301 = vmatpush.msra.mxu0 0.0
    %302 = vmatpush.msra.mxu0 0.0
    %303 = vmatpush.msra.mxu0 0.0
    %304 = vmatpush.msra.mxu0 0.0
    %305 = vmatpush.msra.mxu0 0.0
    %306 = vmatpush.msra.mxu0 0.0
    %307 = vmatpush.msra.mxu0 0.0
    %308 = vmatpush.msra.mxu0 0.0
    %309 = vmatpush.msra.mxu0 0.0
    %310 = vmatpush.msra.mxu0 0.0
    %311 = vmatpush.msra.mxu0 0.0
    %312 = vmatpush.msra.mxu0 %v208
    %313 = vmatpush.msra.mxu0 %v207
    %314 = vmatpush.msra.mxu0 %v206
    %315 = vmatpush.msra.mxu0 %v205
    %316 = vmatmul.f32.gmra.mxu0 %v296
    %v317 = vpop.f32.mrf.mxu0
    %v318 = vadd.f32 0.0, %v317
    %319 = vmatmul.f32.gmra.mxu0 %v298
    %v320 = vpop.f32.mrf.mxu0
    %v321 = vadd.f32 0.0, %v320
    %322 = vdwg.mxu0
    %s323 = sld [smem:[#allocation2 + $0x1]]
    %v324 = vstv %s323
    %v325 = vmul.f32 %v324, %v318
    %v326 = vmul.f32 %v324, %v321
    %v327 = vadd.f32 %v170, %v325
    %v328 = vadd.f32 %v173, %v326
    %v329 = vmul.f32 %v324, %v271
    %v330 = vmul.f32 %v324, %v272
    %v331 = vxor.u32 %v327, 2147483648
    %v332 = vxor.u32 %v328, 2147483648
    %v333 = vmul.f32 %v331, 1.442695
    %v334 = vpow.pop %v333
    %v335 = vmul.f32 %v332, 1.442695
    %v336 = vpow.pop %v335
    %v337 = vadd.f32 %v334, 1.0
    %v338 = vadd.f32 %v336, 1.0
    %v339 = vrcp.pop %v337
    %v340 = vmul.f32 %v337, %v339
    %v341 = vsub.f32 1.0, %v340
    %v342 = vmul.f32 %v339, %v341
    %v343 = vadd.f32 %v339, %v342
    %vm344 = vweird.f32 %v337
    %vm345 = vweird.f32 %v339
    %vm346 = vmor %vm344, %vm345
    %v347 = vsel %vm346, %v339, %v343
    %v348 = vand.u32 2147483647, %v337
    %vm349 = vcmp.eq.f32.partialorder %v348, 8.507059e+37
    %v350 = vand.u32 %v337, 2147483648
    %v351 = vor.u32 1.1754944e-38, %v350
    %v352 = vsel %vm349, %v351, %v347
    %v353 = vmul.f32 1.0, %v352
    %v354 = vrcp.pop %v338
    %v355 = vmul.f32 %v338, %v354
    %v356 = vsub.f32 1.0, %v355
    %v357 = vmul.f32 %v354, %v356
    %v358 = vadd.f32 %v354, %v357
    %vm359 = vweird.f32 %v338
    %vm360 = vweird.f32 %v354
    %vm361 = vmor %vm359, %vm360
    %v362 = vsel %vm361, %v354, %v358
    %v363 = vand.u32 2147483647, %v338
    %vm364 = vcmp.eq.f32.partialorder %v363, 8.507059e+37
    %v365 = vand.u32 %v338, 2147483648
    %v366 = vor.u32 1.1754944e-38, %v365
    %v367 = vsel %vm364, %v366, %v362
    %v368 = vmul.f32 1.0, %v367
    %v369 = vmul.f32 %v353, 2.0
    %v370 = vmul.f32 %v368, 2.0
    %v371 = vsub.f32 %v369, 1.0
    %v372 = vsub.f32 %v370, 1.0
    %375 = vrot.lane.b32.xlu0 %v371, 64
    %v376 = vpop.permute.xlu0 %375
    %377 = vrot.lane.b32.xlu0 %v372, 64
    %v378 = vpop.permute.xlu0 %377
    %v381 = vmul.f32 %v353, %v376
    %v382 = vmul.f32 %v368, %v378
    %385 = vrot.lane.b32.xlu0 %v329, 96
    %v386 = vpop.permute.xlu0 %385
    %387 = vrot.lane.b32.xlu0 %v330, 96
    %v388 = vpop.permute.xlu0 %387
    %v391 = vmul.f32 %v353, %v386
    %v392 = vmul.f32 %v368, %v388
    %395 = vrot.lane.b32.xlu0 %v391, 32
    %v396 = vpop.permute.xlu0 %395
    %397 = vrot.lane.b32.xlu0 %v392, 32
    %v398 = vpop.permute.xlu0 %397
    %v401 = vadd.f32 %v381, %v396
    %v402 = vadd.f32 %v382, %v398
    %v403 = vtanh.pop %v401
    %v404 = vtanh.pop %v402
    %407 = vrot.lane.b32.xlu0 %v403, 32
    %v408 = vpop.permute.xlu0 %407
    %409 = vrot.lane.b32.xlu0 %v404, 32
    %v410 = vpop.permute.xlu0 %409
    %v413 = vmul.f32 %v353, %v408
    %v414 = vmul.f32 %v368, %v410
    %v415 = vsel %vm103, %v401, %v413
    %v416 = vsel %vm103, %v402, %v414
    %s417 = scalar_lea.vmem [#allocation10], 16
    %418 = vst.msk [vmem:[%s417] sm:$0xff] %vm287, %v415
    %419 = vst.msk [vmem:[%s417 + $0x8] sm:$0xff] %vm287, %v416
    %s420 = sld [smem:[#allocation2 + $0x2]]
    %v421 = vstv %s420
    %v422 = vmul.f32 %v421, %v318
    %v423 = vmul.f32 %v421, %v321
    %v424 = vadd.f32 %v176, %v422
    %v425 = vadd.f32 %v179, %v423
    %v426 = vmul.f32 %v421, %v271
    %v427 = vmul.f32 %v421, %v272
    %v428 = vxor.u32 %v424, 2147483648
    %v429 = vxor.u32 %v425, 2147483648
    %v430 = vmul.f32 %v428, 1.442695
    %v431 = vpow.pop %v430
    %v432 = vmul.f32 %v429, 1.442695
    %v433 = vpow.pop %v432
    %v434 = vadd.f32 %v431, 1.0
    %v435 = vadd.f32 %v433, 1.0
    %v436 = vrcp.pop %v434
    %v437 = vmul.f32 %v434, %v436
    %v438 = vsub.f32 1.0, %v437
    %v439 = vmul.f32 %v436, %v438
    %v440 = vadd.f32 %v436, %v439
    %vm441 = vweird.f32 %v434
    %vm442 = vweird.f32 %v436
    %vm443 = vmor %vm441, %vm442
    %v444 = vsel %vm443, %v436, %v440
    %v445 = vand.u32 2147483647, %v434
    %vm446 = vcmp.eq.f32.partialorder %v445, 8.507059e+37
    %v447 = vand.u32 %v434, 2147483648
    %v448 = vor.u32 1.1754944e-38, %v447
    %v449 = vsel %vm446, %v448, %v444
    %v450 = vmul.f32 1.0, %v449
    %v451 = vrcp.pop %v435
    %v452 = vmul.f32 %v435, %v451
    %v453 = vsub.f32 1.0, %v452
    %v454 = vmul.f32 %v451, %v453
    %v455 = vadd.f32 %v451, %v454
    %vm456 = vweird.f32 %v435
    %vm457 = vweird.f32 %v451
    %vm458 = vmor %vm456, %vm457
    %v459 = vsel %vm458, %v451, %v455
    %v460 = vand.u32 2147483647, %v435
    %vm461 = vcmp.eq.f32.partialorder %v460, 8.507059e+37
    %v462 = vand.u32 %v435, 2147483648
    %v463 = vor.u32 1.1754944e-38, %v462
    %v464 = vsel %vm461, %v463, %v459
    %v465 = vmul.f32 1.0, %v464
    %v466 = vmul.f32 %v450, 2.0
    %v467 = vmul.f32 %v465, 2.0
    %v468 = vsub.f32 %v466, 1.0
    %v469 = vsub.f32 %v467, 1.0
    %472 = vrot.lane.b32.xlu0 %v468, 64
    %v473 = vpop.permute.xlu0 %472
    %474 = vrot.lane.b32.xlu0 %v469, 64
    %v475 = vpop.permute.xlu0 %474
    %v478 = vmul.f32 %v450, %v473
    %v479 = vmul.f32 %v465, %v475
    %482 = vrot.lane.b32.xlu0 %v426, 96
    %v483 = vpop.permute.xlu0 %482
    %484 = vrot.lane.b32.xlu0 %v427, 96
    %v485 = vpop.permute.xlu0 %484
    %v488 = vmul.f32 %v450, %v483
    %v489 = vmul.f32 %v465, %v485
    %492 = vrot.lane.b32.xlu0 %v488, 32
    %v493 = vpop.permute.xlu0 %492
    %494 = vrot.lane.b32.xlu0 %v489, 32
    %v495 = vpop.permute.xlu0 %494
    %v498 = vadd.f32 %v478, %v493
    %v499 = vadd.f32 %v479, %v495
    %v500 = vtanh.pop %v498
    %v501 = vtanh.pop %v499
    %504 = vrot.lane.b32.xlu0 %v500, 32
    %v505 = vpop.permute.xlu0 %504
    %506 = vrot.lane.b32.xlu0 %v501, 32
    %v507 = vpop.permute.xlu0 %506
    %v510 = vmul.f32 %v450, %v505
    %v511 = vmul.f32 %v465, %v507
    %v512 = vsel %vm103, %v498, %v510
    %v513 = vsel %vm103, %v499, %v511
    %s514 = scalar_lea.vmem [#allocation10], 32
    %515 = vst.msk [vmem:[%s514] sm:$0xff] %vm287, %v512
    %516 = vst.msk [vmem:[%s514 + $0x8] sm:$0xff] %vm287, %v513
    %521 = vrot.lane.b32.xlu0 %v413, 96
    %v522 = vpop.permute.xlu0 %521
    %523 = vrot.lane.b32.xlu0 %v414, 96
    %v524 = vpop.permute.xlu0 %523
    %525 = vrot.lane.b32.xlu0 %v510, 96
    %v526 = vpop.permute.xlu0 %525
    %527 = vrot.lane.b32.xlu0 %v511, 96
    %v528 = vpop.permute.xlu0 %527
    %v529 = vsel %vm103, %v522, 0
    %v531 = vsel %vm103, %v524, 0
    %v533 = vsel %vm103, %v526, 0
    %v535 = vsel %vm103, %v528, 0
    %537 = vmatpush.msra.mxu0 0.0
    %538 = vmatpush.msra.mxu0 0.0
    %539 = vmatpush.msra.mxu0 0.0
    %540 = vmatpush.msra.mxu0 0.0
    %541 = vmatpush.msra.mxu0 0.0
    %542 = vmatpush.msra.mxu0 0.0
    %543 = vmatpush.msra.mxu0 0.0
    %544 = vmatpush.msra.mxu0 0.0
    %545 = vmatpush.msra.mxu0 0.0
    %546 = vmatpush.msra.mxu0 0.0
    %547 = vmatpush.msra.mxu0 0.0
    %548 = vmatpush.msra.mxu0 0.0
    %549 = vmatpush.msra.mxu0 %v208
    %550 = vmatpush.msra.mxu0 %v207
    %551 = vmatpush.msra.mxu0 %v206
    %552 = vmatpush.msra.mxu0 %v205
    %553 = vmatmul.f32.gmra.mxu0 %v529
    %v554 = vpop.f32.mrf.mxu0
    %v555 = vadd.f32 0.0, %v554
    %556 = vmatmul.f32.gmra.mxu0 %v531
    %v557 = vpop.f32.mrf.mxu0
    %v558 = vadd.f32 0.0, %v557
    %559 = vmatmul.f32.gmra.mxu0 %v533
    %v560 = vpop.f32.mrf.mxu0
    %v561 = vadd.f32 0.0, %v560
    %562 = vmatmul.f32.gmra.mxu0 %v535
    %v563 = vpop.f32.mrf.mxu0
    %v564 = vadd.f32 0.0, %v563
    %565 = vdwg.mxu0
    %s566 = sld [smem:[#allocation2 + $0x3]]
    %v567 = vstv %s566
    %v568 = vmul.f32 %v567, %v555
    %v569 = vmul.f32 %v567, %v558
    %v570 = vadd.f32 %v182, %v568
    %v571 = vadd.f32 %v185, %v569
    %v572 = vmul.f32 %v567, %v401
    %v573 = vmul.f32 %v567, %v402
    %v574 = vxor.u32 %v570, 2147483648
    %v575 = vxor.u32 %v571, 2147483648
    %v576 = vmul.f32 %v574, 1.442695
    %v577 = vpow.pop %v576
    %v578 = vmul.f32 %v575, 1.442695
    %v579 = vpow.pop %v578
    %v580 = vadd.f32 %v577, 1.0
    %v581 = vadd.f32 %v579, 1.0
    %v582 = vrcp.pop %v580
    %v583 = vmul.f32 %v580, %v582
    %v584 = vsub.f32 1.0, %v583
    %v585 = vmul.f32 %v582, %v584
    %v586 = vadd.f32 %v582, %v585
    %vm587 = vweird.f32 %v580
    %vm588 = vweird.f32 %v582
    %vm589 = vmor %vm587, %vm588
    %v590 = vsel %vm589, %v582, %v586
    %v591 = vand.u32 2147483647, %v580
    %vm592 = vcmp.eq.f32.partialorder %v591, 8.507059e+37
    %v593 = vand.u32 %v580, 2147483648
    %v594 = vor.u32 1.1754944e-38, %v593
    %v595 = vsel %vm592, %v594, %v590
    %v596 = vmul.f32 1.0, %v595
    %v597 = vrcp.pop %v581
    %v598 = vmul.f32 %v581, %v597
    %v599 = vsub.f32 1.0, %v598
    %v600 = vmul.f32 %v597, %v599
    %v601 = vadd.f32 %v597, %v600
    %vm602 = vweird.f32 %v581
    %vm603 = vweird.f32 %v597
    %vm604 = vmor %vm602, %vm603
    %v605 = vsel %vm604, %v597, %v601
    %v606 = vand.u32 2147483647, %v581
    %vm607 = vcmp.eq.f32.partialorder %v606, 8.507059e+37
    %v608 = vand.u32 %v581, 2147483648
    %v609 = vor.u32 1.1754944e-38, %v608
    %v610 = vsel %vm607, %v609, %v605
    %v611 = vmul.f32 1.0, %v610
    %v612 = vmul.f32 %v596, 2.0
    %v613 = vmul.f32 %v611, 2.0
    %v614 = vsub.f32 %v612, 1.0
    %v615 = vsub.f32 %v613, 1.0
    %618 = vrot.lane.b32.xlu0 %v614, 64
    %v619 = vpop.permute.xlu0 %618
    %620 = vrot.lane.b32.xlu0 %v615, 64
    %v621 = vpop.permute.xlu0 %620
    %v624 = vmul.f32 %v596, %v619
    %v625 = vmul.f32 %v611, %v621
    %628 = vrot.lane.b32.xlu0 %v572, 96
    %v629 = vpop.permute.xlu0 %628
    %630 = vrot.lane.b32.xlu0 %v573, 96
    %v631 = vpop.permute.xlu0 %630
    %v634 = vmul.f32 %v596, %v629
    %v635 = vmul.f32 %v611, %v631
    %638 = vrot.lane.b32.xlu0 %v634, 32
    %v639 = vpop.permute.xlu0 %638
    %640 = vrot.lane.b32.xlu0 %v635, 32
    %v641 = vpop.permute.xlu0 %640
    %v644 = vadd.f32 %v624, %v639
    %v645 = vadd.f32 %v625, %v641
    %v646 = vtanh.pop %v644
    %v647 = vtanh.pop %v645
    %650 = vrot.lane.b32.xlu0 %v646, 32
    %v651 = vpop.permute.xlu0 %650
    %652 = vrot.lane.b32.xlu0 %v647, 32
    %v653 = vpop.permute.xlu0 %652
    %v656 = vmul.f32 %v596, %v651
    %v657 = vmul.f32 %v611, %v653
    %v658 = vsel %vm103, %v644, %v656
    %v659 = vsel %vm103, %v645, %v657
    %s660 = scalar_lea.vmem [#allocation10], 48
    %661 = vst.msk [vmem:[%s660] sm:$0xff] %vm287, %v658
    %662 = vst.msk [vmem:[%s660 + $0x8] sm:$0xff] %vm287, %v659
    %s663 = sld [smem:[#allocation2 + $0x4]]
    %v664 = vstv %s663
    %v665 = vmul.f32 %v664, %v555
    %v666 = vmul.f32 %v664, %v558
    %v667 = vadd.f32 %v188, %v665
    %v668 = vadd.f32 %v191, %v666
    %v669 = vmul.f32 %v664, %v401
    %v670 = vmul.f32 %v664, %v402
    %v671 = vxor.u32 %v667, 2147483648
    %v672 = vxor.u32 %v668, 2147483648
    %v673 = vmul.f32 %v671, 1.442695
    %v674 = vpow.pop %v673
    %v675 = vmul.f32 %v672, 1.442695
    %v676 = vpow.pop %v675
    %v677 = vadd.f32 %v674, 1.0
    %v678 = vadd.f32 %v676, 1.0
    %v679 = vrcp.pop %v677
    %v680 = vmul.f32 %v677, %v679
    %v681 = vsub.f32 1.0, %v680
    %v682 = vmul.f32 %v679, %v681
    %v683 = vadd.f32 %v679, %v682
    %vm684 = vweird.f32 %v677
    %vm685 = vweird.f32 %v679
    %vm686 = vmor %vm684, %vm685
    %v687 = vsel %vm686, %v679, %v683
    %v688 = vand.u32 2147483647, %v677
    %vm689 = vcmp.eq.f32.partialorder %v688, 8.507059e+37
    %v690 = vand.u32 %v677, 2147483648
    %v691 = vor.u32 1.1754944e-38, %v690
    %v692 = vsel %vm689, %v691, %v687
    %v693 = vmul.f32 1.0, %v692
    %v694 = vrcp.pop %v678
    %v695 = vmul.f32 %v678, %v694
    %v696 = vsub.f32 1.0, %v695
    %v697 = vmul.f32 %v694, %v696
    %v698 = vadd.f32 %v694, %v697
    %vm699 = vweird.f32 %v678
    %vm700 = vweird.f32 %v694
    %vm701 = vmor %vm699, %vm700
    %v702 = vsel %vm701, %v694, %v698
    %v703 = vand.u32 2147483647, %v678
    %vm704 = vcmp.eq.f32.partialorder %v703, 8.507059e+37
    %v705 = vand.u32 %v678, 2147483648
    %v706 = vor.u32 1.1754944e-38, %v705
    %v707 = vsel %vm704, %v706, %v702
    %v708 = vmul.f32 1.0, %v707
    %v709 = vmul.f32 %v693, 2.0
    %v710 = vmul.f32 %v708, 2.0
    %v711 = vsub.f32 %v709, 1.0
    %v712 = vsub.f32 %v710, 1.0
    %715 = vrot.lane.b32.xlu0 %v711, 64
    %v716 = vpop.permute.xlu0 %715
    %717 = vrot.lane.b32.xlu0 %v712, 64
    %v718 = vpop.permute.xlu0 %717
    %v721 = vmul.f32 %v693, %v716
    %v722 = vmul.f32 %v708, %v718
    %725 = vrot.lane.b32.xlu0 %v669, 96
    %v726 = vpop.permute.xlu0 %725
    %727 = vrot.lane.b32.xlu0 %v670, 96
    %v728 = vpop.permute.xlu0 %727
    %v731 = vmul.f32 %v693, %v726
    %v732 = vmul.f32 %v708, %v728
    %735 = vrot.lane.b32.xlu0 %v731, 32
    %v736 = vpop.permute.xlu0 %735
    %737 = vrot.lane.b32.xlu0 %v732, 32
    %v738 = vpop.permute.xlu0 %737
    %v741 = vadd.f32 %v721, %v736
    %v742 = vadd.f32 %v722, %v738
    %v743 = vtanh.pop %v741
    %v744 = vtanh.pop %v742
    %747 = vrot.lane.b32.xlu0 %v743, 32
    %v748 = vpop.permute.xlu0 %747
    %749 = vrot.lane.b32.xlu0 %v744, 32
    %v750 = vpop.permute.xlu0 %749
    %v753 = vmul.f32 %v693, %v748
    %v754 = vmul.f32 %v708, %v750
    %v755 = vsel %vm103, %v741, %v753
    %v756 = vsel %vm103, %v742, %v754
    %s757 = scalar_lea.vmem [#allocation10], 64
    %758 = vst.msk [vmem:[%s757] sm:$0xff] %vm287, %v755
    %759 = vst.msk [vmem:[%s757 + $0x8] sm:$0xff] %vm287, %v756
    %s760 = sld [smem:[#allocation2 + $0x5]]
    %v761 = vstv %s760
    %v762 = vmul.f32 %v761, %v561
    %v763 = vmul.f32 %v761, %v564
    %v764 = vadd.f32 %v194, %v762
    %v765 = vadd.f32 %v197, %v763
    %v766 = vmul.f32 %v761, %v498
    %v767 = vmul.f32 %v761, %v499
    %v768 = vxor.u32 %v764, 2147483648
    %v769 = vxor.u32 %v765, 2147483648
    %v770 = vmul.f32 %v768, 1.442695
    %v771 = vpow.pop %v770
    %v772 = vmul.f32 %v769, 1.442695
    %v773 = vpow.pop %v772
    %v774 = vadd.f32 %v771, 1.0
    %v775 = vadd.f32 %v773, 1.0
    %v776 = vrcp.pop %v774
    %v777 = vmul.f32 %v774, %v776
    %v778 = vsub.f32 1.0, %v777
    %v779 = vmul.f32 %v776, %v778
    %v780 = vadd.f32 %v776, %v779
    %vm781 = vweird.f32 %v774
    %vm782 = vweird.f32 %v776
    %vm783 = vmor %vm781, %vm782
    %v784 = vsel %vm783, %v776, %v780
    %v785 = vand.u32 2147483647, %v774
    %vm786 = vcmp.eq.f32.partialorder %v785, 8.507059e+37
    %v787 = vand.u32 %v774, 2147483648
    %v788 = vor.u32 1.1754944e-38, %v787
    %v789 = vsel %vm786, %v788, %v784
    %v790 = vmul.f32 1.0, %v789
    %v791 = vrcp.pop %v775
    %v792 = vmul.f32 %v775, %v791
    %v793 = vsub.f32 1.0, %v792
    %v794 = vmul.f32 %v791, %v793
    %v795 = vadd.f32 %v791, %v794
    %vm796 = vweird.f32 %v775
    %vm797 = vweird.f32 %v791
    %vm798 = vmor %vm796, %vm797
    %v799 = vsel %vm798, %v791, %v795
    %v800 = vand.u32 2147483647, %v775
    %vm801 = vcmp.eq.f32.partialorder %v800, 8.507059e+37
    %v802 = vand.u32 %v775, 2147483648
    %v803 = vor.u32 1.1754944e-38, %v802
    %v804 = vsel %vm801, %v803, %v799
    %v805 = vmul.f32 1.0, %v804
    %v806 = vmul.f32 %v790, 2.0
    %v807 = vmul.f32 %v805, 2.0
    %v808 = vsub.f32 %v806, 1.0
    %v809 = vsub.f32 %v807, 1.0
    %812 = vrot.lane.b32.xlu0 %v808, 64
    %v813 = vpop.permute.xlu0 %812
    %814 = vrot.lane.b32.xlu0 %v809, 64
    %v815 = vpop.permute.xlu0 %814
    %v818 = vmul.f32 %v790, %v813
    %v819 = vmul.f32 %v805, %v815
    %822 = vrot.lane.b32.xlu0 %v766, 96
    %v823 = vpop.permute.xlu0 %822
    %824 = vrot.lane.b32.xlu0 %v767, 96
    %v825 = vpop.permute.xlu0 %824
    %v828 = vmul.f32 %v790, %v823
    %v829 = vmul.f32 %v805, %v825
    %832 = vrot.lane.b32.xlu0 %v828, 32
    %v833 = vpop.permute.xlu0 %832
    %834 = vrot.lane.b32.xlu0 %v829, 32
    %v835 = vpop.permute.xlu0 %834
    %v838 = vadd.f32 %v818, %v833
    %v839 = vadd.f32 %v819, %v835
    %v840 = vtanh.pop %v838
    %v841 = vtanh.pop %v839
    %844 = vrot.lane.b32.xlu0 %v840, 32
    %v845 = vpop.permute.xlu0 %844
    %846 = vrot.lane.b32.xlu0 %v841, 32
    %v847 = vpop.permute.xlu0 %846
    %v850 = vmul.f32 %v790, %v845
    %v851 = vmul.f32 %v805, %v847
    %v852 = vsel %vm103, %v838, %v850
    %v853 = vsel %vm103, %v839, %v851
    %s854 = scalar_lea.vmem [#allocation10], 80
    %855 = vst.msk [vmem:[%s854] sm:$0xff] %vm287, %v852
    %856 = vst.msk [vmem:[%s854 + $0x8] sm:$0xff] %vm287, %v853
    %s857 = sld [smem:[#allocation2 + $0x6]]
    %v858 = vstv %s857
    %v859 = vmul.f32 %v858, %v561
    %v860 = vmul.f32 %v858, %v564
    %v861 = vadd.f32 %v200, %v859
    %v862 = vadd.f32 %v203, %v860
    %v863 = vmul.f32 %v858, %v498
    %v864 = vmul.f32 %v858, %v499
    %v865 = vxor.u32 %v861, 2147483648
    %v866 = vxor.u32 %v862, 2147483648
    %v867 = vmul.f32 %v865, 1.442695
    %v868 = vpow.pop %v867
    %v869 = vmul.f32 %v866, 1.442695
    %v870 = vpow.pop %v869
    %v871 = vadd.f32 %v868, 1.0
    %v872 = vadd.f32 %v870, 1.0
    %v873 = vrcp.pop %v871
    %v874 = vmul.f32 %v871, %v873
    %v875 = vsub.f32 1.0, %v874
    %v876 = vmul.f32 %v873, %v875
    %v877 = vadd.f32 %v873, %v876
    %vm878 = vweird.f32 %v871
    %vm879 = vweird.f32 %v873
    %vm880 = vmor %vm878, %vm879
    %v881 = vsel %vm880, %v873, %v877
    %v882 = vand.u32 2147483647, %v871
    %vm883 = vcmp.eq.f32.partialorder %v882, 8.507059e+37
    %v884 = vand.u32 %v871, 2147483648
    %v885 = vor.u32 1.1754944e-38, %v884
    %v886 = vsel %vm883, %v885, %v881
    %v887 = vmul.f32 1.0, %v886
    %v888 = vrcp.pop %v872
    %v889 = vmul.f32 %v872, %v888
    %v890 = vsub.f32 1.0, %v889
    %v891 = vmul.f32 %v888, %v890
    %v892 = vadd.f32 %v888, %v891
    %vm893 = vweird.f32 %v872
    %vm894 = vweird.f32 %v888
    %vm895 = vmor %vm893, %vm894
    %v896 = vsel %vm895, %v888, %v892
    %v897 = vand.u32 2147483647, %v872
    %vm898 = vcmp.eq.f32.partialorder %v897, 8.507059e+37
    %v899 = vand.u32 %v872, 2147483648
    %v900 = vor.u32 1.1754944e-38, %v899
    %v901 = vsel %vm898, %v900, %v896
    %v902 = vmul.f32 1.0, %v901
    %v903 = vmul.f32 %v887, 2.0
    %v904 = vmul.f32 %v902, 2.0
    %v905 = vsub.f32 %v903, 1.0
    %v906 = vsub.f32 %v904, 1.0
    %909 = vrot.lane.b32.xlu0 %v905, 64
    %v910 = vpop.permute.xlu0 %909
    %911 = vrot.lane.b32.xlu0 %v906, 64
    %v912 = vpop.permute.xlu0 %911
    %v915 = vmul.f32 %v887, %v910
    %v916 = vmul.f32 %v902, %v912
    %919 = vrot.lane.b32.xlu0 %v863, 96
    %v920 = vpop.permute.xlu0 %919
    %921 = vrot.lane.b32.xlu0 %v864, 96
    %v922 = vpop.permute.xlu0 %921
    %v925 = vmul.f32 %v887, %v920
    %v926 = vmul.f32 %v902, %v922
    %929 = vrot.lane.b32.xlu0 %v925, 32
    %v930 = vpop.permute.xlu0 %929
    %931 = vrot.lane.b32.xlu0 %v926, 32
    %v932 = vpop.permute.xlu0 %931
    %v935 = vadd.f32 %v915, %v930
    %v936 = vadd.f32 %v916, %v932
    %v937 = vtanh.pop %v935
    %v938 = vtanh.pop %v936
    %941 = vrot.lane.b32.xlu0 %v937, 32
    %v942 = vpop.permute.xlu0 %941
    %943 = vrot.lane.b32.xlu0 %v938, 32
    %v944 = vpop.permute.xlu0 %943
    %v947 = vmul.f32 %v887, %v942
    %v948 = vmul.f32 %v902, %v944
    %v949 = vsel %vm103, %v935, %v947
    %v950 = vsel %vm103, %v936, %v948
    %s951 = scalar_lea.vmem [#allocation10], 96
    %952 = vst.msk [vmem:[%s951] sm:$0xff] %vm287, %v949
    %953 = vst.msk [vmem:[%s951 + $0x8] sm:$0xff] %vm287, %v950
    // Predicated region
    $region38: #{tpu_custom_call.1} parent=1 // pred_check
      _
    $region39: #{tpu_custom_call.1} parent=1 // pred_check_branch
      %955 = sbr.rel (0) target = $region41
    $region40: #{tpu_custom_call.1} parent=1 // pred_region
      %957 = vsyncadd [#allocation4], 0
      %s958 = sshll.u32 [#allocation10], 4
      %s959 = int_to_ptr.vmem [resolvable:$true] %s958
      %s960 = sshll.u32 %s5, 4
      %s961 = int_to_ptr.hbm [resolvable:$true] %s960
      %966 = dma.vmem_to_hbm [thread:$0]  %s959, 1792, %s961, [#allocation4], 128, 128, 8
    $region41: #{tpu_custom_call.1} parent=1 // pred_fallthru
      _
    // Predicated region
    $region42: #{tpu_custom_call.1} parent=1 // pred_check
      _
    $region43: #{tpu_custom_call.1} parent=1 // pred_check_branch
      %968 = sbr.rel (0) target = $region45
    $region44: #{tpu_custom_call.1} parent=1 // pred_region
      %970 = dma.done [#allocation4], 1792
    $region45: #{tpu_custom_call.1} parent=1 // pred_fallthru
      _
    %971 = vsyncpa [#allocation3], 1
    %972 = vsyncpa [#allocation8], 1
    %973 = vsyncpa [#allocation4], 1
    %974 = vsyncpa [#allocation5], 1

</llo_original>
